<compile_context>
chip_gen: v7x
topology: tpu7x:2x2x1
jax: 0.10.0
libtpu: 0.0.40
codegen_flags: <defaults>
</compile_context>

<pallas_src>
import functools

import jax
import jax.numpy as jnp
from jax.experimental import pallas as pl
from jax.experimental.pallas import tpu as pltpu


def _leaky_relu(x, slope=0.1):
    return jnp.where(x > 0, x, slope * x)


def _round_up(n, m):
    return ((n + m - 1) // m) * m


def _pad2(a, rows, cols):
    pr, pc = rows - a.shape[0], cols - a.shape[1]
    if pr == 0 and pc == 0:
        return a
    return jnp.pad(a, ((0, pr), (0, pc)))


def _pick_row_tile(bp, row_tile):
    """Largest multiple-of-8 divisor of bp that is <= row_tile (>= 8).

    Avoids padding the batch beyond round_up(B, 8): no garbage rows are
    computed or written back to HBM.
    """
    cap = max(8, min(_round_up(row_tile, 8), bp))
    d = cap
    while d >= 8:
        if bp % d == 0:
            return d
        d -= 8
    return 8


def _sub_rows(tm, target=256):
    """Rows per in-kernel sub-block (bounds vreg live ranges between layers)."""
    if tm <= target:
        return tm
    d = target
    while d >= 8:
        if tm % d == 0:
            return d
        d -= 8
    return tm


def decoder_kernel(x_ref, w1_ref, b1_ref, w2_ref, b2_ref, w3_ref, b3_ref, out_ref,
                   *, sub_rows, compute_dtype):
    # Weights/biases are VMEM-resident across grid steps (constant index_maps);
    # hoist the reads once per step.
    w1, w2, w3 = w1_ref[...], w2_ref[...], w3_ref[...]
    b1, b2, b3 = b1_ref[...], b2_ref[...], b3_ref[...]

    n_sub = x_ref.shape[0] // sub_rows

    def body(i, carry):
        r = pl.multiple_of(i * sub_rows, sub_rows)
        # Cast the streamed activation to the MXU dtype *inside* the kernel
        # (no extra XLA pad/cast pass over x in HBM).
        x = x_ref[pl.ds(r, sub_rows), :].astype(compute_dtype)
        # layer 1: (sub, d3) @ (d3, d2p) -- f32 accumulate on the MXU
        h = jnp.dot(x, w1, preferred_element_type=jnp.float32) + b1
        h = _leaky_relu(h)
        # layer 2: (sub, d2p) @ (d2p, d1p)
        h = jnp.dot(h.astype(compute_dtype), w2,
                    preferred_element_type=jnp.float32) + b2
        h = _leaky_relu(h)
        # layer 3: (sub, d1p) @ (d1p, dop)
        h = jnp.dot(h.astype(compute_dtype), w3,
                    preferred_element_type=jnp.float32) + b3
        out_ref[pl.ds(r, sub_rows), :] = _leaky_relu(h).astype(out_ref.dtype)
        return carry

    jax.lax.fori_loop(0, n_sub, body, 0, unroll=True)


def prepare_params(params, *, param_dtype=jnp.bfloat16):
    """Pad each layer's OUTPUT dim to 128 lanes and cast weights once.

    Call once and reuse: keeps the pad/cast out of the per-call hot path.
    Zero-padded output columns + zero bias survive LeakyReLU (leaky(0)=0) and the
    matching zero weight rows of the next layer contribute nothing, so the math
    is exact on the original columns.
    """
    w1, b1 = params["w1"], params["b1"]
    w2, b2 = params["w2"], params["b2"]
    w3, b3 = params["w3"], params["b3"]
    d3, d2 = w1.shape
    _, d1 = w2.shape
    _, do = w3.shape
    d2p, d1p, dop = (_round_up(d, 128) for d in (d2, d1, do))
    return dict(
        w1=_pad2(w1, d3, d2p).astype(param_dtype),            # K dim (d3) not padded
        b1=_pad2(b1.reshape(1, -1), 1, d2p).astype(jnp.float32),
        w2=_pad2(w2, d2p, d1p).astype(param_dtype),
        b2=_pad2(b2.reshape(1, -1), 1, d1p).astype(jnp.float32),
        w3=_pad2(w3, d1p, dop).astype(param_dtype),
        b3=_pad2(b3.reshape(1, -1), 1, dop).astype(jnp.float32),
        dims=(d3, d2, d1, do),
    )


def decoder_basic(x, prepared, *, compute_dtype=jnp.bfloat16,
                  out_dtype=jnp.bfloat16, row_tile=1024):
    """x: (B, hidden_dim3) f32. prepared: output of prepare_params."""
    d3, d2, d1, do = prepared["dims"]
    w1p, b1p = prepared["w1"], prepared["b1"]
    w2p, b2p = prepared["w2"], prepared["b2"]
    w3p, b3p = prepared["w3"], prepared["b3"]
    d2p, d1p, dop = w1p.shape[1], w2p.shape[1], w3p.shape[1]

    B = x.shape[0]
    assert x.shape[1] == d3

    # Pad only the batch axis (to a multiple of 8).  The streamed K dim stays
    # un-padded: block last dim == full array dim, so no zero HBM traffic.
    bp = _round_up(max(B, 8), 8)
    tm = _pick_row_tile(bp, row_tile)
    n_steps = bp // tm
    xp = _pad2(x, bp, d3) if bp != B else x

    sub = _sub_rows(tm)

    x_spec = pl.BlockSpec((tm, d3), lambda i: (i, 0))
    out_spec = pl.BlockSpec((tm, dop), lambda i: (i, 0))
    resident = lambda a: pl.BlockSpec(a.shape, lambda i: (0, 0))

    # --- VMEM budget + cost estimate -----------------------------------------
    resident_bytes = sum(int(a.size) * a.dtype.itemsize
                         for a in (w1p, b1p, w2p, b2p, w3p, b3p))
    stream_bytes = 2 * (tm * d3 * xp.dtype.itemsize
                        + tm * dop * jnp.dtype(out_dtype).itemsize)  # double-buffered
    scratch_bytes = 4 * sub * max(d2p, d1p, dop) * 4                 # intermediates
    vmem_needed = resident_bytes + stream_bytes + scratch_bytes
    vmem_limit = min(max(32 * 1024 * 1024, int(vmem_needed * 2)), 100 * 1024 * 1024)
    # TODO(synk): if resident weights approach ~40 MiB (hidden dims >= ~2048 on
    # v7x's 64 MiB VMEM), switch to a K-tiled "arbitrary" grid axis with an f32
    # VMEM accumulator instead of keeping all three weights VMEM-resident.

    cost = pl.CostEstimate(
        flops=2 * bp * (d3 * d2p + d2p * d1p + d1p * dop),
        transcendentals=0,
        bytes_accessed=int(xp.size * xp.dtype.itemsize
                           + resident_bytes
                           + bp * dop * jnp.dtype(out_dtype).itemsize),
    )

    kernel = functools.partial(decoder_kernel, sub_rows=sub,
                               compute_dtype=compute_dtype)
    out_p = pl.pallas_call(
        kernel,
        out_shape=jax.ShapeDtypeStruct((bp, dop), out_dtype),
        grid=(n_steps,),
        in_specs=[x_spec,
                  resident(w1p), resident(b1p),
                  resident(w2p), resident(b2p),
                  resident(w3p), resident(b3p)],
        out_specs=out_spec,
        compiler_params=pltpu.CompilerParams(
            # Batch steps are independent -> megacore sharding.
            # TODO(synk): on v7x consider pltpu.CORE_PARALLEL for this axis (and
            # pick tm so n_steps is even) to guarantee both TensorCores get work.
            dimension_semantics=("parallel",),
            vmem_limit_bytes=vmem_limit,
        ),
        cost_estimate=cost,
    )(xp, w1p, b1p, w2p, b2p, w3p, b3p)

    # Drop padded rows/columns (padded lanes are exactly zero, but slice anyway).
    return out_p[:B, :do]


def init_params(key, hidden_dim3, hidden_dim2, hidden_dim1, output_dim):
    """Deterministic init mirroring nn.Linear's uniform(-1/sqrt(fan_in), ...)."""
    ks = jax.random.split(key, 6)

    def linear(kw, kb, fan_in, fan_out):
        bound = 1.0 / jnp.sqrt(fan_in)
        # stored as (in, out) == W_pytorch.T
        w = jax.random.uniform(kw, (fan_in, fan_out), jnp.float32, -bound, bound)
        b = jax.random.uniform(kb, (1, fan_out), jnp.float32, -bound, bound)
        return w, b

    w1, b1 = linear(ks[0], ks[1], hidden_dim3, hidden_dim2)
    w2, b2 = linear(ks[2], ks[3], hidden_dim2, hidden_dim1)
    w3, b3 = linear(ks[4], ks[5], hidden_dim1, output_dim)
    return dict(w1=w1, b1=b1, w2=w2, b2=b2, w3=w3, b3=b3)


def decoder_basic_ref(x, p):
    """Pure-JAX f32 reference for correctness."""
    h = x @ p["w1"] + p["b1"]
    h = jnp.where(h > 0, h, 0.1 * h)
    h = h @ p["w2"] + p["b2"]
    h = jnp.where(h > 0, h, 0.1 * h)
    h = h @ p["w3"] + p["b3"]
    return jnp.where(h > 0, h, 0.1 * h)


if __name__ == "__main__":
    key = jax.random.PRNGKey(0)
    k_x, k_p = jax.random.split(key)

    hidden_dim3, hidden_dim2, hidden_dim1, output_dim = 32, 64, 96, 128
    batch = 8

    x = jax.random.normal(k_x, (batch, hidden_dim3), jnp.float32)
    params = init_params(k_p, hidden_dim3, hidden_dim2, hidden_dim1, output_dim)
    ref = decoder_basic_ref(x, params)

    # f32 operands + f32 output: tight numerical check of kernel structure/padding.
    prep_f32 = prepare_params(params, param_dtype=jnp.float32)
    out_f32 = jax.block_until_ready(
        decoder_basic(x, prep_f32, compute_dtype=jnp.float32, out_dtype=jnp.float32))
    assert out_f32.shape == (batch, output_dim)
    assert jnp.allclose(out_f32, ref, atol=1e-5, rtol=1e-5)

    # bf16 fast path (default): bf16 weights/activations on the MXU with f32
    # accumulation and a bf16 output stream (halves the dominant HBM write).
    prep_bf16 = prepare_params(params, param_dtype=jnp.bfloat16)
    out_bf16 = jax.block_until_ready(decoder_basic(x, prep_bf16))
    assert out_bf16.shape == (batch, output_dim)
    assert jnp.allclose(out_bf16.astype(jnp.float32), ref, atol=5e-2, rtol=5e-2)

    print("KERNEL_OK")
</pallas_src>

<mosaic_0001>
module attributes {stable_mosaic.version = 11 : i64} {
  func.func @decoder_kernel(%arg0: i32, %arg1: memref<8x32xf32, #tpu.memory_space<vmem>>, %arg2: memref<32x128xf32, #tpu.memory_space<vmem>>, %arg3: memref<1x128xf32, #tpu.memory_space<vmem>>, %arg4: memref<128x128xf32, #tpu.memory_space<vmem>>, %arg5: memref<1x128xf32, #tpu.memory_space<vmem>>, %arg6: memref<128x128xf32, #tpu.memory_space<vmem>>, %arg7: memref<1x128xf32, #tpu.memory_space<vmem>>, %arg8: memref<8x128xf32, #tpu.memory_space<vmem>>) attributes {dimension_semantics = [#tpu.dimension_semantics<parallel>], iteration_bounds = array<i64: 1>, scalar_prefetch = 0 : i64, scratch_operands = 0 : i64, tpu.core_type = #tpu.core_type<tc>, window_params = [{transform_indices = @transform_0, window_bounds = array<i64: 8, 32>}, {pipeline_mode = #tpu.pipeline_mode<synchronous>, transform_indices = @transform_1, window_bounds = array<i64: 32, 128>}, {pipeline_mode = #tpu.pipeline_mode<synchronous>, transform_indices = @transform_2, window_bounds = array<i64: 1, 128>}, {pipeline_mode = #tpu.pipeline_mode<synchronous>, transform_indices = @transform_3, window_bounds = array<i64: 128, 128>}, {pipeline_mode = #tpu.pipeline_mode<synchronous>, transform_indices = @transform_4, window_bounds = array<i64: 1, 128>}, {pipeline_mode = #tpu.pipeline_mode<synchronous>, transform_indices = @transform_5, window_bounds = array<i64: 128, 128>}, {pipeline_mode = #tpu.pipeline_mode<synchronous>, transform_indices = @transform_6, window_bounds = array<i64: 1, 128>}, {transform_indices = @transform_7, window_bounds = array<i64: 8, 128>}]} {
    %c0 = arith.constant 0 : index
    %c0_0 = arith.constant 0 : index
    %0 = vector.load %arg2[%c0, %c0_0] : memref<32x128xf32, #tpu.memory_space<vmem>>, vector<32x128xf32>
    %c0_1 = arith.constant 0 : index
    %c0_2 = arith.constant 0 : index
    %1 = vector.load %arg4[%c0_1, %c0_2] : memref<128x128xf32, #tpu.memory_space<vmem>>, vector<128x128xf32>
    %c0_3 = arith.constant 0 : index
    %c0_4 = arith.constant 0 : index
    %2 = vector.load %arg6[%c0_3, %c0_4] : memref<128x128xf32, #tpu.memory_space<vmem>>, vector<128x128xf32>
    %c0_5 = arith.constant 0 : index
    %c0_6 = arith.constant 0 : index
    %3 = vector.load %arg3[%c0_5, %c0_6] : memref<1x128xf32, #tpu.memory_space<vmem>>, vector<1x128xf32>
    %c0_7 = arith.constant 0 : index
    %c0_8 = arith.constant 0 : index
    %4 = vector.load %arg5[%c0_7, %c0_8] : memref<1x128xf32, #tpu.memory_space<vmem>>, vector<1x128xf32>
    %c0_9 = arith.constant 0 : index
    %c0_10 = arith.constant 0 : index
    %5 = vector.load %arg7[%c0_9, %c0_10] : memref<1x128xf32, #tpu.memory_space<vmem>>, vector<1x128xf32>
    %c0_i32 = arith.constant 0 : i32
    %c8_i32 = arith.constant 8 : i32
    %6 = arith.muli %c0_i32, %c8_i32 : i32
    %7 = tpu.assume_multiple %6, 8 : i32
    %8 = arith.index_cast %7 : i32 to index
    %c0_11 = arith.constant 0 : index
    %9 = vector.load %arg1[%8, %c0_11] : memref<8x32xf32, #tpu.memory_space<vmem>>, vector<8x32xf32>
    %cst = arith.constant dense<0.000000e+00> : vector<8x128xf32>
    %10 = tpu.matmul %9, %0, %cst {dimension_numbers = #tpu.dot_dimension_numbers<[1], [0], [0], [1], [0, 0, 1, 1], [], []>} : vector<8x32xf32>, vector<32x128xf32>, vector<8x128xf32> -> vector<8x128xf32>
    %11 = vector.broadcast %3 : vector<1x128xf32> to vector<8x128xf32>
    %12 = arith.addf %10, %11 : vector<8x128xf32>
    %cst_12 = arith.constant 0.000000e+00 : f32
    %13 = vector.broadcast %cst_12 : f32 to vector<8x128xf32>
    %14 = arith.cmpf ogt, %12, %13 : vector<8x128xf32>
    %cst_13 = arith.constant 1.000000e-01 : f32
    %15 = vector.broadcast %cst_13 : f32 to vector<8x128xf32>
    %16 = arith.mulf %15, %12 : vector<8x128xf32>
    %17 = arith.select %14, %12, %16 : vector<8x128xi1>, vector<8x128xf32>
    %cst_14 = arith.constant dense<0.000000e+00> : vector<8x128xf32>
    %18 = tpu.matmul %17, %1, %cst_14 {dimension_numbers = #tpu.dot_dimension_numbers<[1], [0], [0], [1], [0, 0, 1, 1], [], []>} : vector<8x128xf32>, vector<128x128xf32>, vector<8x128xf32> -> vector<8x128xf32>
    %19 = vector.broadcast %4 : vector<1x128xf32> to vector<8x128xf32>
    %20 = arith.addf %18, %19 : vector<8x128xf32>
    %cst_15 = arith.constant 0.000000e+00 : f32
    %21 = vector.broadcast %cst_15 : f32 to vector<8x128xf32>
    %22 = arith.cmpf ogt, %20, %21 : vector<8x128xf32>
    %cst_16 = arith.constant 1.000000e-01 : f32
    %23 = vector.broadcast %cst_16 : f32 to vector<8x128xf32>
    %24 = arith.mulf %23, %20 : vector<8x128xf32>
    %25 = arith.select %22, %20, %24 : vector<8x128xi1>, vector<8x128xf32>
    %cst_17 = arith.constant dense<0.000000e+00> : vector<8x128xf32>
    %26 = tpu.matmul %25, %2, %cst_17 {dimension_numbers = #tpu.dot_dimension_numbers<[1], [0], [0], [1], [0, 0, 1, 1], [], []>} : vector<8x128xf32>, vector<128x128xf32>, vector<8x128xf32> -> vector<8x128xf32>
    %27 = vector.broadcast %5 : vector<1x128xf32> to vector<8x128xf32>
    %28 = arith.addf %26, %27 : vector<8x128xf32>
    %cst_18 = arith.constant 0.000000e+00 : f32
    %29 = vector.broadcast %cst_18 : f32 to vector<8x128xf32>
    %30 = arith.cmpf ogt, %28, %29 : vector<8x128xf32>
    %cst_19 = arith.constant 1.000000e-01 : f32
    %31 = vector.broadcast %cst_19 : f32 to vector<8x128xf32>
    %32 = arith.mulf %31, %28 : vector<8x128xf32>
    %33 = arith.select %30, %28, %32 : vector<8x128xi1>, vector<8x128xf32>
    %34 = arith.index_cast %7 : i32 to index
    %c0_20 = arith.constant 0 : index
    %35 = vector.load %arg8[%34, %c0_20] : memref<8x128xf32, #tpu.memory_space<vmem>>, vector<8x128xf32>
    tpu.vector_store %arg8[%34, %c0_20], %33 {strides = array<i32>} : memref<8x128xf32, #tpu.memory_space<vmem>>, vector<8x128xf32>,
    %c1_i32 = arith.constant 1 : i32
    return
  }
  func.func @transform_0(%arg0: i32) -> (i32, i32) {
    %c0_i32 = arith.constant 0 : i32
    %c0_i32_0 = arith.constant 0 : i32
    return %arg0, %c0_i32 : i32, i32
  }
  func.func @transform_1(%arg0: i32) -> (i32, i32) {
    %c0_i32 = arith.constant 0 : i32
    %c0_i32_0 = arith.constant 0 : i32
    %c0_i32_1 = arith.constant 0 : i32
    return %c0_i32, %c0_i32_0 : i32, i32
  }
  func.func @transform_2(%arg0: i32) -> (i32, i32) {
    %c0_i32 = arith.constant 0 : i32
    %c0_i32_0 = arith.constant 0 : i32
    %c0_i32_1 = arith.constant 0 : i32
    return %c0_i32, %c0_i32_0 : i32, i32
  }
  func.func @transform_3(%arg0: i32) -> (i32, i32) {
    %c0_i32 = arith.constant 0 : i32
    %c0_i32_0 = arith.constant 0 : i32
    %c0_i32_1 = arith.constant 0 : i32
    return %c0_i32, %c0_i32_0 : i32, i32
  }
  func.func @transform_4(%arg0: i32) -> (i32, i32) {
    %c0_i32 = arith.constant 0 : i32
    %c0_i32_0 = arith.constant 0 : i32
    %c0_i32_1 = arith.constant 0 : i32
    return %c0_i32, %c0_i32_0 : i32, i32
  }
  func.func @transform_5(%arg0: i32) -> (i32, i32) {
    %c0_i32 = arith.constant 0 : i32
    %c0_i32_0 = arith.constant 0 : i32
    %c0_i32_1 = arith.constant 0 : i32
    return %c0_i32, %c0_i32_0 : i32, i32
  }
  func.func @transform_6(%arg0: i32) -> (i32, i32) {
    %c0_i32 = arith.constant 0 : i32
    %c0_i32_0 = arith.constant 0 : i32
    %c0_i32_1 = arith.constant 0 : i32
    return %c0_i32, %c0_i32_0 : i32, i32
  }
  func.func @transform_7(%arg0: i32) -> (i32, i32) {
    %c0_i32 = arith.constant 0 : i32
    %c0_i32_0 = arith.constant 0 : i32
    return %arg0, %c0_i32 : i32, i32
  }
}

</mosaic_0001>

<llo_original>
// kernel: tpu_custom_call.1
$region0: #{tpu_custom_call.1}
  #allocation0 [shape = 'u32[]', space=smem, size = 0x4, offset = 0x4, fixed_abs, tag = 'smem constant byte address 0x4 - core index']
  #allocation1 [shape = 'u32[144,128]{1,0:T(1,128)}', space=vmem, size = 0x12000, scoped, tag = 'internal scratch']
  %s0 = inlined_call_operand.hbm [shape: f32[8,32], index: 0, kind: input, shape index: {}]
  %s1 = inlined_call_operand.hbm [shape: f32[32,128], index: 1, kind: input, shape index: {}]
  %s2 = inlined_call_operand.vmem [shape: f32[1,128], index: 2, kind: input, shape index: {}]
  %s3 = inlined_call_operand.hbm [shape: f32[128,128], index: 3, kind: input, shape index: {}]
  %s4 = inlined_call_operand.vmem [shape: f32[1,128], index: 4, kind: input, shape index: {}]
  %s5 = inlined_call_operand.hbm [shape: f32[128,128], index: 5, kind: input, shape index: {}]
  %s6 = inlined_call_operand.vmem [shape: f32[1,128], index: 6, kind: input, shape index: {}]
  %s7 = inlined_call_operand.hbm [shape: f32[8,128], index: 7, kind: output, shape index: {}]
  %s8 = sld [smem:[#allocation0]]
  $region54: #{tpu_custom_call.1} parent=0
    _
  %s10 = ssub.s32 1, %s8
  %s11 = scalar_select 0, %s10, %s8
  $region1: #{tpu_custom_call.1} parent=0
    #allocation2 [shape = 'u8[4096]{0}', space=vmem, size = 0x1000, scoped, tag = 'input window, operand 0, single buffered']
    #allocation3 [shape = 's32[1]{0}', space=sflag, size = 0x4, scoped, tag = 'scoped memory for tpu_custom_call.1']
    #allocation4 [shape = 's32[1]{0}', space=sflag, size = 0x4, scoped, tag = 'scoped memory for tpu_custom_call.1']
    #allocation5 [shape = 'u8[16384]{0}', space=vmem, size = 0x4000, scoped, tag = 'input window, operand 1, single buffered']
    #allocation6 [shape = 's32[1]{0}', space=sflag, size = 0x4, scoped, tag = 'scoped memory for tpu_custom_call.1']
    #allocation7 [shape = 'u8[65536]{0}', space=vmem, size = 0x10000, scoped, tag = 'input window, operand 3, single buffered']
    #allocation8 [shape = 'u8[65536]{0}', space=vmem, size = 0x10000, scoped, tag = 'input window, operand 5, single buffered']
    #allocation9 [shape = 's32[1]{0}', space=sflag, size = 0x4, scoped, tag = 'scoped memory for tpu_custom_call.1']
    #allocation10 [shape = 'u8[4096]{0}', space=vmem, size = 0x1000, scoped, tag = 'output window, operand 0, single buffered']
    %12 = vsyncpa [#allocation3], 0
    %13 = vsyncpa [#allocation6], 0
    %14 = vsyncpa [#allocation9], 0
    %15 = vsyncpa [#allocation4], 0
    // Predicated region
    $region2: #{tpu_custom_call.1} parent=1 // pred_check
      _
    $region3: #{tpu_custom_call.1} parent=1 // pred_check_branch
      %17 = sbr.rel (0) target = $region5
    $region4: #{tpu_custom_call.1} parent=1 // pred_region
      %s19 = ssub.s32 128, 128
      %20 = vsyncadd [#allocation3], %s19
      %s22 = sshll.u32 [#allocation2], 4
      %s23 = int_to_ptr.vmem [resolvable:$true] %s22
      %25 = dma.hbm_to_vmem [thread:$0]  %s0, 128, %s23, [#allocation3]
    $region5: #{tpu_custom_call.1} parent=1 // pred_fallthru
      _
    // Predicated region
    $region6: #{tpu_custom_call.1} parent=1 // pred_check
      _
    $region7: #{tpu_custom_call.1} parent=1 // pred_check_branch
      %27 = sbr.rel (0) target = $region9
    $region8: #{tpu_custom_call.1} parent=1 // pred_region
      %s29 = ssub.s32 512, 512
      %30 = vsyncadd [#allocation6], %s29
      %s31 = sshll.u32 [#allocation5], 4
      %s32 = int_to_ptr.vmem [resolvable:$true] %s31
      %37 = dma.hbm_to_vmem [thread:$0]  %s1, 512, %s32, [#allocation6], 128, 128, 8
    $region9: #{tpu_custom_call.1} parent=1 // pred_fallthru
      _
    // Predicated region
    $region10: #{tpu_custom_call.1} parent=1 // pred_check
      _
    $region11: #{tpu_custom_call.1} parent=1 // pred_check_branch
      %39 = sbr.rel (0) target = $region13
    $region12: #{tpu_custom_call.1} parent=1 // pred_region
      _
    $region13: #{tpu_custom_call.1} parent=1 // pred_fallthru
      _
    // Predicated region
    $region14: #{tpu_custom_call.1} parent=1 // pred_check
      _
    $region15: #{tpu_custom_call.1} parent=1 // pred_check_branch
      %41 = sbr.rel (0) target = $region17
    $region16: #{tpu_custom_call.1} parent=1 // pred_region
      %s43 = ssub.s32 2048, 2048
      %44 = vsyncadd [#allocation6], %s43
      %s45 = sshll.u32 [#allocation7], 4
      %s46 = int_to_ptr.vmem [resolvable:$true] %s45
      %51 = dma.hbm_to_vmem [thread:$0]  %s3, 2048, %s46, [#allocation6], 128, 128, 8
    $region17: #{tpu_custom_call.1} parent=1 // pred_fallthru
      _
    // Predicated region
    $region18: #{tpu_custom_call.1} parent=1 // pred_check
      _
    $region19: #{tpu_custom_call.1} parent=1 // pred_check_branch
      %53 = sbr.rel (0) target = $region21
    $region20: #{tpu_custom_call.1} parent=1 // pred_region
      _
    $region21: #{tpu_custom_call.1} parent=1 // pred_fallthru
      _
    // Predicated region
    $region22: #{tpu_custom_call.1} parent=1 // pred_check
      _
    $region23: #{tpu_custom_call.1} parent=1 // pred_check_branch
      %55 = sbr.rel (0) target = $region25
    $region24: #{tpu_custom_call.1} parent=1 // pred_region
      %s57 = ssub.s32 2048, 2048
      %58 = vsyncadd [#allocation9], %s57
      %s59 = sshll.u32 [#allocation8], 4
      %s60 = int_to_ptr.vmem [resolvable:$true] %s59
      %65 = dma.hbm_to_vmem [thread:$0]  %s5, 2048, %s60, [#allocation9], 128, 128, 8
    $region25: #{tpu_custom_call.1} parent=1 // pred_fallthru
      _
    // Predicated region
    $region26: #{tpu_custom_call.1} parent=1 // pred_check
      _
    $region27: #{tpu_custom_call.1} parent=1 // pred_check_branch
      %67 = sbr.rel (0) target = $region29
    $region28: #{tpu_custom_call.1} parent=1 // pred_region
      _
    $region29: #{tpu_custom_call.1} parent=1 // pred_fallthru
      _
    // Predicated region
    $region30: #{tpu_custom_call.1} parent=1 // pred_check
      _
    $region31: #{tpu_custom_call.1} parent=1 // pred_check_branch
      %69 = sbr.rel (0) target = $region33
    $region32: #{tpu_custom_call.1} parent=1 // pred_region
      %70 = dma.done [#allocation3], 128
    $region33: #{tpu_custom_call.1} parent=1 // pred_fallthru
      _
    // Predicated region
    $region34: #{tpu_custom_call.1} parent=1 // pred_check
      _
    $region35: #{tpu_custom_call.1} parent=1 // pred_check_branch
      %72 = sbr.rel (0) target = $region37
    $region36: #{tpu_custom_call.1} parent=1 // pred_region
      %73 = dma.done [#allocation6], 512
    $region37: #{tpu_custom_call.1} parent=1 // pred_fallthru
      _
    // Predicated region
    $region38: #{tpu_custom_call.1} parent=1 // pred_check
      _
    $region39: #{tpu_custom_call.1} parent=1 // pred_check_branch
      %75 = sbr.rel (0) target = $region41
    $region40: #{tpu_custom_call.1} parent=1 // pred_region
      %76 = dma.done [#allocation6], 2048
    $region41: #{tpu_custom_call.1} parent=1 // pred_fallthru
      _
    // Predicated region
    $region42: #{tpu_custom_call.1} parent=1 // pred_check
      _
    $region43: #{tpu_custom_call.1} parent=1 // pred_check_branch
      %78 = sbr.rel (0) target = $region45
    $region44: #{tpu_custom_call.1} parent=1 // pred_region
      %79 = dma.done [#allocation9], 2048
    $region45: #{tpu_custom_call.1} parent=1 // pred_fallthru
      _
    %v80 = vld [vmem:[#allocation5] sm:$0xff]
    %v81 = vld [vmem:[#allocation5 + $0x8] sm:$0xff]
    %v82 = vld [vmem:[#allocation5 + $0x10] sm:$0xff]
    %v83 = vld [vmem:[#allocation5 + $0x18] sm:$0xff]
    %v84 = vld [vmem:[#allocation7] sm:$0xff]
    %v85 = vld [vmem:[#allocation7 + $0x8] sm:$0xff]
    %v86 = vld [vmem:[#allocation7 + $0x10] sm:$0xff]
    %v87 = vld [vmem:[#allocation7 + $0x18] sm:$0xff]
    %v88 = vld [vmem:[#allocation7 + $0x20] sm:$0xff]
    %v89 = vld [vmem:[#allocation7 + $0x28] sm:$0xff]
    %v90 = vld [vmem:[#allocation7 + $0x30] sm:$0xff]
    %v91 = vld [vmem:[#allocation7 + $0x38] sm:$0xff]
    %v92 = vld [vmem:[#allocation7 + $0x40] sm:$0xff]
    %v93 = vld [vmem:[#allocation7 + $0x48] sm:$0xff]
    %v94 = vld [vmem:[#allocation7 + $0x50] sm:$0xff]
    %v95 = vld [vmem:[#allocation7 + $0x58] sm:$0xff]
    %v96 = vld [vmem:[#allocation7 + $0x60] sm:$0xff]
    %v97 = vld [vmem:[#allocation7 + $0x68] sm:$0xff]
    %v98 = vld [vmem:[#allocation7 + $0x70] sm:$0xff]
    %v99 = vld [vmem:[#allocation7 + $0x78] sm:$0xff]
    %v100 = vld [vmem:[#allocation8] sm:$0xff]
    %v101 = vld [vmem:[#allocation8 + $0x8] sm:$0xff]
    %v102 = vld [vmem:[#allocation8 + $0x10] sm:$0xff]
    %v103 = vld [vmem:[#allocation8 + $0x18] sm:$0xff]
    %v104 = vld [vmem:[#allocation8 + $0x20] sm:$0xff]
    %v105 = vld [vmem:[#allocation8 + $0x28] sm:$0xff]
    %v106 = vld [vmem:[#allocation8 + $0x30] sm:$0xff]
    %v107 = vld [vmem:[#allocation8 + $0x38] sm:$0xff]
    %v108 = vld [vmem:[#allocation8 + $0x40] sm:$0xff]
    %v109 = vld [vmem:[#allocation8 + $0x48] sm:$0xff]
    %v110 = vld [vmem:[#allocation8 + $0x50] sm:$0xff]
    %v111 = vld [vmem:[#allocation8 + $0x58] sm:$0xff]
    %v112 = vld [vmem:[#allocation8 + $0x60] sm:$0xff]
    %v113 = vld [vmem:[#allocation8 + $0x68] sm:$0xff]
    %v114 = vld [vmem:[#allocation8 + $0x70] sm:$0xff]
    %v115 = vld [vmem:[#allocation8 + $0x78] sm:$0xff]
    %v116 = vld [vmem:[%s2] sm:$0x1]
    %v117 = vld [vmem:[%s4] sm:$0x1]
    %v118 = vld [vmem:[%s6] sm:$0x1]
    %v119 = vld [vmem:[#allocation2] sm:$0xff]
    %v121 = vlaneseq
    %v122 = vshrl.u32 %v121, 7
    %v123 = vsub.s32 0, %v122
    %v124 = vrot.slane %v116, %v123
    %vm126 = vcmask 261120
    %v128 = vsel %vm126, %v119, 0
    %130 = vmatprep.subr.mxu0 0.0
    %131 = vmatpush1.msra.mxu0 %v80
    %132 = vmatprep.subr.mxu0 0.0
    %133 = vmatpush1.msra.mxu0 %v81
    %134 = vmatprep.subr.mxu0 0.0
    %135 = vmatpush1.msra.mxu0 %v82
    %136 = vmatprep.subr.mxu0 0.0
    %137 = vmatpush1.msra.mxu0 %v83
    %138 = vmatprep.subr.mxu0 0.0
    %139 = vmatpush1.msra.mxu0 0.0
    %140 = vmatprep.subr.mxu0 0.0
    %141 = vmatpush1.msra.mxu0 0.0
    %142 = vmatprep.subr.mxu0 0.0
    %143 = vmatpush1.msra.mxu0 0.0
    %144 = vmatprep.subr.mxu0 0.0
    %145 = vmatpush1.msra.mxu0 0.0
    %146 = vmatprep.subr.mxu0 0.0
    %147 = vmatpush1.msra.mxu0 0.0
    %148 = vmatprep.subr.mxu0 0.0
    %149 = vmatpush1.msra.mxu0 0.0
    %150 = vmatprep.subr.mxu0 0.0
    %151 = vmatpush1.msra.mxu0 0.0
    %152 = vmatprep.subr.mxu0 0.0
    %153 = vmatpush1.msra.mxu0 0.0
    %154 = vmatprep.subr.mxu0 0.0
    %155 = vmatpush1.msra.mxu0 0.0
    %156 = vmatprep.subr.mxu0 0.0
    %157 = vmatpush1.msra.mxu0 0.0
    %158 = vmatprep.subr.mxu0 0.0
    %159 = vmatpush1.msra.mxu0 0.0
    %160 = vmatprep.subr.mxu0 0.0
    %161 = vmatpush1.msra.mxu0 0.0
    %162 = vmatprep.subr.mxu0 0.0
    %163 = vmatpush1.msra.mxu0 0.0
    %164 = vmatprep.subr.mxu0 0.0
    %165 = vmatpush1.msra.mxu0 0.0
    %166 = vmatprep.subr.mxu0 0.0
    %167 = vmatpush1.msra.mxu0 0.0
    %168 = vmatprep.subr.mxu0 0.0
    %169 = vmatpush1.msra.mxu0 0.0
    %170 = vmatprep.subr.mxu0 0.0
    %171 = vmatpush1.msra.mxu0 0.0
    %172 = vmatprep.subr.mxu0 0.0
    %173 = vmatpush1.msra.mxu0 0.0
    %174 = vmatprep.subr.mxu0 0.0
    %175 = vmatpush1.msra.mxu0 0.0
    %176 = vmatprep.subr.mxu0 0.0
    %177 = vmatpush1.msra.mxu0 0.0
    %178 = vmatprep.subr.mxu0 0.0
    %179 = vmatpush1.msra.mxu0 0.0
    %180 = vmatprep.subr.mxu0 0.0
    %181 = vmatpush1.msra.mxu0 0.0
    %182 = vmatprep.subr.mxu0 0.0
    %183 = vmatpush1.msra.mxu0 0.0
    %184 = vmatprep.subr.mxu0 0.0
    %185 = vmatpush1.msra.mxu0 0.0
    %186 = vmatprep.subr.mxu0 0.0
    %187 = vmatpush1.msra.mxu0 0.0
    %188 = vmatprep.subr.mxu0 0.0
    %189 = vmatpush1.msra.mxu0 0.0
    %190 = vmatprep.subr.mxu0 0.0
    %191 = vmatpush1.msra.mxu0 0.0
    %192 = vmatprep.subr.mxu0 0.0
    %193 = vmatpush1.msra.mxu0 0.0
    %194 = vmatprep.mubr.f32.mxu0 0.0
    %195 = vmatmul.mubr.f32.gmra.mrb[0].mxu0 %v128
    %v196 = vpop.f32.mrb[0].mxu0
    %v197 = vadd.f32 %v124, %v196
    %v198 = vpop.f32.mrb[0].mxu0
    %199 = vdwg.mxu0
    %vm200 = vcmp.gt.f32.partialorder %v197, 0.0
    %v201 = vmul.f32 %v197, 0.1
    %v202 = vsel %vm200, %v197, %v201
    %v204 = vlaneseq
    %v205 = vshrl.u32 %v204, 7
    %v206 = vsub.s32 0, %v205
    %v207 = vrot.slane %v117, %v206
    %209 = vmatprep.subr.mxu0 0.0
    %210 = vmatpush1.msra.mxu0 %v84
    %211 = vmatprep.subr.mxu0 0.0
    %212 = vmatpush1.msra.mxu0 %v85
    %213 = vmatprep.subr.mxu0 0.0
    %214 = vmatpush1.msra.mxu0 %v86
    %215 = vmatprep.subr.mxu0 0.0
    %216 = vmatpush1.msra.mxu0 %v87
    %217 = vmatprep.subr.mxu0 0.0
    %218 = vmatpush1.msra.mxu0 %v88
    %219 = vmatprep.subr.mxu0 0.0
    %220 = vmatpush1.msra.mxu0 %v89
    %221 = vmatprep.subr.mxu0 0.0
    %222 = vmatpush1.msra.mxu0 %v90
    %223 = vmatprep.subr.mxu0 0.0
    %224 = vmatpush1.msra.mxu0 %v91
    %225 = vmatprep.subr.mxu0 0.0
    %226 = vmatpush1.msra.mxu0 %v92
    %227 = vmatprep.subr.mxu0 0.0
    %228 = vmatpush1.msra.mxu0 %v93
    %229 = vmatprep.subr.mxu0 0.0
    %230 = vmatpush1.msra.mxu0 %v94
    %231 = vmatprep.subr.mxu0 0.0
    %232 = vmatpush1.msra.mxu0 %v95
    %233 = vmatprep.subr.mxu0 0.0
    %234 = vmatpush1.msra.mxu0 %v96
    %235 = vmatprep.subr.mxu0 0.0
    %236 = vmatpush1.msra.mxu0 %v97
    %237 = vmatprep.subr.mxu0 0.0
    %238 = vmatpush1.msra.mxu0 %v98
    %239 = vmatprep.subr.mxu0 0.0
    %240 = vmatpush1.msra.mxu0 %v99
    %241 = vmatprep.subr.mxu0 0.0
    %242 = vmatpush1.msra.mxu0 0.0
    %243 = vmatprep.subr.mxu0 0.0
    %244 = vmatpush1.msra.mxu0 0.0
    %245 = vmatprep.subr.mxu0 0.0
    %246 = vmatpush1.msra.mxu0 0.0
    %247 = vmatprep.subr.mxu0 0.0
    %248 = vmatpush1.msra.mxu0 0.0
    %249 = vmatprep.subr.mxu0 0.0
    %250 = vmatpush1.msra.mxu0 0.0
    %251 = vmatprep.subr.mxu0 0.0
    %252 = vmatpush1.msra.mxu0 0.0
    %253 = vmatprep.subr.mxu0 0.0
    %254 = vmatpush1.msra.mxu0 0.0
    %255 = vmatprep.subr.mxu0 0.0
    %256 = vmatpush1.msra.mxu0 0.0
    %257 = vmatprep.subr.mxu0 0.0
    %258 = vmatpush1.msra.mxu0 0.0
    %259 = vmatprep.subr.mxu0 0.0
    %260 = vmatpush1.msra.mxu0 0.0
    %261 = vmatprep.subr.mxu0 0.0
    %262 = vmatpush1.msra.mxu0 0.0
    %263 = vmatprep.subr.mxu0 0.0
    %264 = vmatpush1.msra.mxu0 0.0
    %265 = vmatprep.subr.mxu0 0.0
    %266 = vmatpush1.msra.mxu0 0.0
    %267 = vmatprep.subr.mxu0 0.0
    %268 = vmatpush1.msra.mxu0 0.0
    %269 = vmatprep.subr.mxu0 0.0
    %270 = vmatpush1.msra.mxu0 0.0
    %271 = vmatprep.subr.mxu0 0.0
    %272 = vmatpush1.msra.mxu0 0.0
    %273 = vmatprep.mubr.f32.mxu0 0.0
    %274 = vmatmul.mubr.f32.gmra.mrb[0].mxu0 %v202
    %v275 = vpop.f32.mrb[0].mxu0
    %v276 = vadd.f32 %v207, %v275
    %v277 = vpop.f32.mrb[0].mxu0
    %278 = vdwg.mxu0
    %vm279 = vcmp.gt.f32.partialorder %v276, 0.0
    %v280 = vmul.f32 %v276, 0.1
    %v281 = vsel %vm279, %v276, %v280
    %v283 = vlaneseq
    %v284 = vshrl.u32 %v283, 7
    %v285 = vsub.s32 0, %v284
    %v286 = vrot.slane %v118, %v285
    %288 = vmatprep.subr.mxu0 0.0
    %289 = vmatpush1.msra.mxu0 %v100
    %290 = vmatprep.subr.mxu0 0.0
    %291 = vmatpush1.msra.mxu0 %v101
    %292 = vmatprep.subr.mxu0 0.0
    %293 = vmatpush1.msra.mxu0 %v102
    %294 = vmatprep.subr.mxu0 0.0
    %295 = vmatpush1.msra.mxu0 %v103
    %296 = vmatprep.subr.mxu0 0.0
    %297 = vmatpush1.msra.mxu0 %v104
    %298 = vmatprep.subr.mxu0 0.0
    %299 = vmatpush1.msra.mxu0 %v105
    %300 = vmatprep.subr.mxu0 0.0
    %301 = vmatpush1.msra.mxu0 %v106
    %302 = vmatprep.subr.mxu0 0.0
    %303 = vmatpush1.msra.mxu0 %v107
    %304 = vmatprep.subr.mxu0 0.0
    %305 = vmatpush1.msra.mxu0 %v108
    %306 = vmatprep.subr.mxu0 0.0
    %307 = vmatpush1.msra.mxu0 %v109
    %308 = vmatprep.subr.mxu0 0.0
    %309 = vmatpush1.msra.mxu0 %v110
    %310 = vmatprep.subr.mxu0 0.0
    %311 = vmatpush1.msra.mxu0 %v111
    %312 = vmatprep.subr.mxu0 0.0
    %313 = vmatpush1.msra.mxu0 %v112
    %314 = vmatprep.subr.mxu0 0.0
    %315 = vmatpush1.msra.mxu0 %v113
    %316 = vmatprep.subr.mxu0 0.0
    %317 = vmatpush1.msra.mxu0 %v114
    %318 = vmatprep.subr.mxu0 0.0
    %319 = vmatpush1.msra.mxu0 %v115
    %320 = vmatprep.subr.mxu0 0.0
    %321 = vmatpush1.msra.mxu0 0.0
    %322 = vmatprep.subr.mxu0 0.0
    %323 = vmatpush1.msra.mxu0 0.0
    %324 = vmatprep.subr.mxu0 0.0
    %325 = vmatpush1.msra.mxu0 0.0
    %326 = vmatprep.subr.mxu0 0.0
    %327 = vmatpush1.msra.mxu0 0.0
    %328 = vmatprep.subr.mxu0 0.0
    %329 = vmatpush1.msra.mxu0 0.0
    %330 = vmatprep.subr.mxu0 0.0
    %331 = vmatpush1.msra.mxu0 0.0
    %332 = vmatprep.subr.mxu0 0.0
    %333 = vmatpush1.msra.mxu0 0.0
    %334 = vmatprep.subr.mxu0 0.0
    %335 = vmatpush1.msra.mxu0 0.0
    %336 = vmatprep.subr.mxu0 0.0
    %337 = vmatpush1.msra.mxu0 0.0
    %338 = vmatprep.subr.mxu0 0.0
    %339 = vmatpush1.msra.mxu0 0.0
    %340 = vmatprep.subr.mxu0 0.0
    %341 = vmatpush1.msra.mxu0 0.0
    %342 = vmatprep.subr.mxu0 0.0
    %343 = vmatpush1.msra.mxu0 0.0
    %344 = vmatprep.subr.mxu0 0.0
    %345 = vmatpush1.msra.mxu0 0.0
    %346 = vmatprep.subr.mxu0 0.0
    %347 = vmatpush1.msra.mxu0 0.0
    %348 = vmatprep.subr.mxu0 0.0
    %349 = vmatpush1.msra.mxu0 0.0
    %350 = vmatprep.subr.mxu0 0.0
    %351 = vmatpush1.msra.mxu0 0.0
    %352 = vmatprep.mubr.f32.mxu0 0.0
    %353 = vmatmul.mubr.f32.gmra.mrb[0].mxu0 %v281
    %v354 = vpop.f32.mrb[0].mxu0
    %v355 = vadd.f32 %v286, %v354
    %v356 = vpop.f32.mrb[0].mxu0
    %357 = vdwg.mxu0
    %vm358 = vcmp.gt.f32.partialorder %v355, 0.0
    %v359 = vmul.f32 %v355, 0.1
    %v360 = vsel %vm358, %v355, %v359
    %361 = vst [vmem:[#allocation10] sm:$0xff] %v360
    // Predicated region
    $region46: #{tpu_custom_call.1} parent=1 // pred_check
      _
    $region47: #{tpu_custom_call.1} parent=1 // pred_check_branch
      %363 = sbr.rel (0) target = $region49
    $region48: #{tpu_custom_call.1} parent=1 // pred_region
      %s365 = ssub.s32 128, 128
      %366 = vsyncadd [#allocation4], %s365
      %s368 = sshll.u32 [#allocation10], 4
      %s369 = int_to_ptr.vmem [resolvable:$true] %s368
      %371 = dma.vmem_to_hbm [thread:$0]  %s369, 128, %s7, [#allocation4]
    $region49: #{tpu_custom_call.1} parent=1 // pred_fallthru
      _
    // Predicated region
    $region50: #{tpu_custom_call.1} parent=1 // pred_check
      _
    $region51: #{tpu_custom_call.1} parent=1 // pred_check_branch
      %373 = sbr.rel (0) target = $region53
    $region52: #{tpu_custom_call.1} parent=1 // pred_region
      %374 = dma.done [#allocation4], 128
    $region53: #{tpu_custom_call.1} parent=1 // pred_fallthru
      _
    %375 = vsyncpa [#allocation3], 1
    %376 = vsyncpa [#allocation6], 1
    %377 = vsyncpa [#allocation9], 1
    %378 = vsyncpa [#allocation4], 1

</llo_original>
